<compile_context>
chip_gen: v7x
topology: tpu7x:2x2x1
jax: 0.10.0
libtpu: 0.0.40
codegen_flags: <defaults>
</compile_context>

<pallas_src>
import functools

import jax
import jax.numpy as jnp
import numpy as np
from jax import lax
from jax.experimental import pallas as pl
from jax.experimental.pallas import tpu as pltpu

_EPS = 1e-5
_LANE = 128


def _round_up(n, m):
    return ((n + m - 1) // m) * m


# ---------------------------------------------------------------------------
# Kernel
# ---------------------------------------------------------------------------
def _bn_relu(z, gamma, beta, inv_b):
    """Training-mode BatchNorm1d (biased batch variance, eps=1e-5) folded into
    a single scale/shift, followed by ReLU.  All math in f32."""
    mu = jnp.sum(z, axis=0, keepdims=True) * inv_b
    var = jnp.sum(jnp.square(z - mu), axis=0, keepdims=True) * inv_b
    scale = gamma * lax.rsqrt(var + _EPS)          # rsqrt -> EUP slot
    shift = beta - mu * scale
    return jnp.maximum(z * scale + shift, 0.0)


def _value_kernel(x_ref, w_ref, v_ref, out_ref, *, n_in_p, n_hid_p):
    B = x_ref.shape[0]
    inv_b = jnp.float32(1.0 / B)

    # ---- unpack the f32 vector-parameter slab ([8, 2*n_hid_p]) ----
    v = v_ref[...]
    g1, be1 = v[0:1, :n_hid_p], v[0:1, n_hid_p:]
    g2, be2 = v[1:2, :n_hid_p], v[1:2, n_hid_p:]
    bp1, b3 = v[2:3, :n_hid_p], v[2:3, n_hid_p:]
    b4 = v[3:4, :n_hid_p]

    xb = x_ref[...].astype(jnp.bfloat16)                       # [B, n_in_p]

    # ---- layer 1: ResLinear(n_in -> n_hid, bn=True, projection skip) ----
    # main Linear + projection Linear fused into one MXU pass.
    # (b1 omitted: exactly cancelled by the BN mean subtraction.)
    w1cat = w_ref[0:n_in_p, :]                                 # [n_in_p, 2*n_hid_p] bf16
    y1 = jnp.dot(xb, w1cat, preferred_element_type=jnp.float32)
    z1 = y1[:, :n_hid_p]
    skip1 = y1[:, n_hid_p:] + bp1
    r1 = _bn_relu(z1, g1, be1, inv_b) + skip1                  # [B, n_hid_p] f32

    # ---- layer 2: ResLinear(n_hid -> n_hid, bn=True, identity skip) ----
    # (b2 omitted: cancelled by BN.)
    w2 = w_ref[n_in_p:n_in_p + n_hid_p, 0:n_hid_p]
    z2 = jnp.dot(r1.astype(jnp.bfloat16), w2, preferred_element_type=jnp.float32)
    r2 = _bn_relu(z2, g2, be2, inv_b) + r1

    # ---- layer 3: ResLinear(n_hid -> n_hid, bn=False, identity skip) ----
    w3 = w_ref[n_in_p:n_in_p + n_hid_p, n_hid_p:2 * n_hid_p]
    z3 = jnp.dot(r2.astype(jnp.bfloat16), w3, preferred_element_type=jnp.float32) + b3
    r3 = jnp.maximum(z3, 0.0) + r2

    # ---- head: Linear(n_hid -> 1), kept lane-dense (padded to n_hid_p cols) ----
    w4 = w_ref[n_in_p + n_hid_p:n_in_p + 2 * n_hid_p, 0:n_hid_p]
    out_ref[...] = jnp.dot(r3.astype(jnp.bfloat16), w4,
                           preferred_element_type=jnp.float32) + b4


# ---------------------------------------------------------------------------
# Host-side parameter packing + wrapper
# ---------------------------------------------------------------------------
def pack_params(params, n_in, n_hid):
    """Pack unpadded f32 parameters into (bf16 weight slab, f32 vector slab)."""
    (w1, b1, g1, be1, wp1, bp1, w2, b2, g2, be2, w3, b3, w4, b4) = params
    del b1, b2  # cancelled exactly by training-mode BatchNorm mean subtraction
    n_in_p = _round_up(n_in, _LANE)
    n_hid_p = _round_up(n_hid, _LANE)

    def pad2(a, rows, cols):
        return jnp.zeros((rows, cols), jnp.float32).at[:a.shape[0], :a.shape[1]].set(a)

    # weight slab (bf16): rows [0, n_in_p)           -> [ w1 | wp1 ]
    #                     rows [n_in_p, +n_hid_p)    -> [ w2 | w3  ]
    #                     rows [.., n_in_p+2*n_hid_p)-> [ w4 | 0   ]
    top = jnp.concatenate([pad2(w1, n_in_p, n_hid_p), pad2(wp1, n_in_p, n_hid_p)], axis=1)
    mid = jnp.concatenate([pad2(w2, n_hid_p, n_hid_p), pad2(w3, n_hid_p, n_hid_p)], axis=1)
    bot = jnp.concatenate([pad2(w4, n_hid_p, n_hid_p),
                           jnp.zeros((n_hid_p, n_hid_p), jnp.float32)], axis=1)
    w_slab = jnp.concatenate([top, mid, bot], axis=0).astype(jnp.bfloat16)

    # vector slab (f32, 8 x 2*n_hid_p):
    #   row 0: [gamma1|beta1]  row 1: [gamma2|beta2]  row 2: [bp1|b3]  row 3: [b4|0]
    def row(a, b):
        return jnp.concatenate([pad2(a, 1, n_hid_p), pad2(b, 1, n_hid_p)], axis=1)

    zvec = jnp.zeros((1, n_hid), jnp.float32)
    zrow = jnp.zeros((1, 2 * n_hid_p), jnp.float32)
    v_slab = jnp.concatenate(
        [row(g1, be1), row(g2, be2), row(bp1, b3), row(b4, zvec),
         zrow, zrow, zrow, zrow], axis=0)
    return w_slab, v_slab


@functools.partial(jax.jit, static_argnames=("n_in", "n_hid"))
def value_forward(x, w_slab, v_slab, *, n_in, n_hid):
    """x: [B, n_in] f32 -> [B, 1] f32."""
    B = x.shape[0]
    n_in_p = _round_up(n_in, _LANE)
    n_hid_p = _round_up(n_hid, _LANE)
    if n_in_p != n_in:
        x = jnp.concatenate([x, jnp.zeros((B, n_in_p - n_in), x.dtype)], axis=1)

    kernel = functools.partial(_value_kernel, n_in_p=n_in_p, n_hid_p=n_hid_p)
    flops = 2 * B * (n_in_p * 2 * n_hid_p + 3 * n_hid_p * n_hid_p)
    bytes_accessed = (B * n_in_p * 4 + w_slab.size * 2 + v_slab.size * 4
                      + B * n_hid_p * 4)

    out_padded = pl.pallas_call(
        kernel,
        out_shape=jax.ShapeDtypeStruct((B, n_hid_p), jnp.float32),
        in_specs=[pl.BlockSpec(memory_space=pltpu.MemorySpace.VMEM)] * 3,
        out_specs=pl.BlockSpec(memory_space=pltpu.MemorySpace.VMEM),
        cost_estimate=pl.CostEstimate(flops=flops,
                                      transcendentals=2 * n_hid_p,
                                      bytes_accessed=bytes_accessed),
    )(x, w_slab, v_slab)
    return out_padded[:, :1]


# ---------------------------------------------------------------------------
# Parameter init + references
# ---------------------------------------------------------------------------
def init_params(key, n_in, n_hid):
    ks = jax.random.split(key, 10)

    def lin(kw, kb, fan_in, fan_out):
        bound = 1.0 / np.sqrt(fan_in)
        w = jax.random.uniform(kw, (fan_in, fan_out), jnp.float32, -bound, bound)
        b = jax.random.uniform(kb, (1, fan_out), jnp.float32, -bound, bound)
        return w, b

    w1, b1 = lin(ks[0], ks[1], n_in, n_hid)
    wp1, bp1 = lin(ks[2], ks[3], n_in, n_hid)     # projection skip (n_in != n_hid)
    w2, b2 = lin(ks[4], ks[5], n_hid, n_hid)
    w3, b3 = lin(ks[6], ks[7], n_hid, n_hid)
    w4, b4 = lin(ks[8], ks[9], n_hid, 1)

    g1 = jnp.ones((1, n_hid), jnp.float32); be1 = jnp.zeros((1, n_hid), jnp.float32)
    g2 = jnp.ones((1, n_hid), jnp.float32); be2 = jnp.zeros((1, n_hid), jnp.float32)

    return (w1, b1, g1, be1, wp1, bp1, w2, b2, g2, be2, w3, b3, w4, b4)


def value_reference_f32(x, params):
    """PyTorch-faithful pure-f32 reference (training-mode BatchNorm)."""
    (w1, b1, g1, be1, wp1, bp1, w2, b2, g2, be2, w3, b3, w4, b4) = params

    def bn(z, g, b):
        mu = jnp.mean(z, axis=0, keepdims=True)
        var = jnp.mean(jnp.square(z - mu), axis=0, keepdims=True)
        return (z - mu) / jnp.sqrt(var + _EPS) * g + b

    r1 = jnp.maximum(bn(x @ w1 + b1, g1, be1), 0.0) + (x @ wp1 + bp1)
    r2 = jnp.maximum(bn(r1 @ w2 + b2, g2, be2), 0.0) + r1
    r3 = jnp.maximum(r2 @ w3 + b3, 0.0) + r2
    return r3 @ w4 + b4


def value_reference_bf16(x, params):
    """Same network with matmul inputs in bf16 / f32 accumulate (kernel's MXU
    precision); BN / skip math stays f32."""
    (w1, b1, g1, be1, wp1, bp1, w2, b2, g2, be2, w3, b3, w4, b4) = params
    bf = jnp.bfloat16

    def dot(a, b):
        return jnp.dot(a.astype(bf), b.astype(bf), preferred_element_type=jnp.float32)

    def bn(z, g, b):
        mu = jnp.mean(z, axis=0, keepdims=True)
        var = jnp.mean(jnp.square(z - mu), axis=0, keepdims=True)
        return (z - mu) * lax.rsqrt(var + _EPS) * g + b

    r1 = jnp.maximum(bn(dot(x, w1) + b1, g1, be1), 0.0) + (dot(x, wp1) + bp1)
    r2 = jnp.maximum(bn(dot(r1, w2) + b2, g2, be2), 0.0) + r1
    r3 = jnp.maximum(dot(r2, w3) + b3, 0.0) + r2
    return dot(r3, w4) + b4


if __name__ == "__main__":
    # Module defaults: n_in=128, n_hid=100 (padded to 128 inside the kernel).
    B, N_IN, N_HID = 16, 128, 100

    key = jax.random.PRNGKey(0)
    k_x, k_p = jax.random.split(key)
    x = jax.random.normal(k_x, (B, N_IN), jnp.float32)
    params = init_params(k_p, N_IN, N_HID)
    w_slab, v_slab = pack_params(params, N_IN, N_HID)

    out = value_forward(x, w_slab, v_slab, n_in=N_IN, n_hid=N_HID)
    out = jax.block_until_ready(out)
    assert out.shape == (B, 1)

    # Tight check against a precision-matched (bf16-MXU) reference.
    ref_bf16 = value_reference_bf16(x, params)
    np.testing.assert_allclose(np.asarray(out), np.asarray(ref_bf16),
                               rtol=2e-3, atol=2e-3)

    # Sanity check against the PyTorch-faithful f32 reference (bf16 MXU inputs
    # introduce a small, bounded approximation error).
    ref_f32 = value_reference_f32(x, params)
    np.testing.assert_allclose(np.asarray(out), np.asarray(ref_f32),
                               rtol=0.15, atol=0.15)

    print("KERNEL_OK")
</pallas_src>

<mosaic_0001>
module attributes {stable_mosaic.version = 11 : i64} {
  func.func @_value_kernel(%arg0: memref<16x128xf32, #tpu.memory_space<vmem>>, %arg1: memref<384x256xbf16, #tpu.memory_space<vmem>>, %arg2: memref<8x256xf32, #tpu.memory_space<vmem>>, %arg3: memref<16x128xf32, #tpu.memory_space<vmem>>) attributes {dimension_semantics = [], scalar_prefetch = 0 : i64, scratch_operands = 0 : i64, tpu.core_type = #tpu.core_type<tc>} {
    %c0 = arith.constant 0 : index
    %c0_0 = arith.constant 0 : index
    %0 = vector.load %arg2[%c0, %c0_0] : memref<8x256xf32, #tpu.memory_space<vmem>>, vector<8x256xf32>
    %1 = vector.extract_strided_slice %0 {offsets = [0, 0], sizes = [1, 128], strides = [1, 1]} : vector<8x256xf32> to vector<1x128xf32>
    %2 = vector.extract_strided_slice %0 {offsets = [0, 128], sizes = [1, 128], strides = [1, 1]} : vector<8x256xf32> to vector<1x128xf32>
    %3 = vector.extract_strided_slice %0 {offsets = [1, 0], sizes = [1, 128], strides = [1, 1]} : vector<8x256xf32> to vector<1x128xf32>
    %4 = vector.extract_strided_slice %0 {offsets = [1, 128], sizes = [1, 128], strides = [1, 1]} : vector<8x256xf32> to vector<1x128xf32>
    %5 = vector.extract_strided_slice %0 {offsets = [2, 0], sizes = [1, 128], strides = [1, 1]} : vector<8x256xf32> to vector<1x128xf32>
    %6 = vector.extract_strided_slice %0 {offsets = [2, 128], sizes = [1, 128], strides = [1, 1]} : vector<8x256xf32> to vector<1x128xf32>
    %7 = vector.extract_strided_slice %0 {offsets = [3, 0], sizes = [1, 128], strides = [1, 1]} : vector<8x256xf32> to vector<1x128xf32>
    %c0_1 = arith.constant 0 : index
    %c0_2 = arith.constant 0 : index
    %8 = vector.load %arg0[%c0_1, %c0_2] : memref<16x128xf32, #tpu.memory_space<vmem>>, vector<16x128xf32>
    %9 = arith.truncf %8 : vector<16x128xf32> to vector<16x128xbf16>
    %c0_3 = arith.constant 0 : index
    %c0_4 = arith.constant 0 : index
    %10 = vector.load %arg1[%c0_3, %c0_4] : memref<384x256xbf16, #tpu.memory_space<vmem>>, vector<128x256xbf16>
    %cst = arith.constant dense<0.000000e+00> : vector<16x256xf32>
    %11 = tpu.matmul %9, %10, %cst {dimension_numbers = #tpu.dot_dimension_numbers<[1], [0], [0], [1], [0, 0, 1, 1], [], []>} : vector<16x128xbf16>, vector<128x256xbf16>, vector<16x256xf32> -> vector<16x256xf32>
    %12 = vector.extract_strided_slice %11 {offsets = [0, 0], sizes = [16, 128], strides = [1, 1]} : vector<16x256xf32> to vector<16x128xf32>
    %13 = vector.extract_strided_slice %11 {offsets = [0, 128], sizes = [16, 128], strides = [1, 1]} : vector<16x256xf32> to vector<16x128xf32>
    %14 = vector.broadcast %5 : vector<1x128xf32> to vector<16x128xf32>
    %15 = arith.addf %13, %14 : vector<16x128xf32>
    %cst_5 = arith.constant dense<0.000000e+00> : vector<128xf32>
    %16 = vector.multi_reduction <add>, %12, %cst_5 [0] : vector<16x128xf32> to vector<128xf32>
    %17 = vector.shape_cast %16 : vector<128xf32> to vector<1x128xf32>
    %cst_6 = arith.constant 6.250000e-02 : f32
    %18 = vector.broadcast %cst_6 : f32 to vector<1x128xf32>
    %19 = arith.mulf %17, %18 : vector<1x128xf32>
    %20 = vector.broadcast %19 : vector<1x128xf32> to vector<16x128xf32>
    %21 = arith.subf %12, %20 : vector<16x128xf32>
    %22 = arith.mulf %21, %21 : vector<16x128xf32>
    %cst_7 = arith.constant dense<0.000000e+00> : vector<128xf32>
    %23 = vector.multi_reduction <add>, %22, %cst_7 [0] : vector<16x128xf32> to vector<128xf32>
    %24 = vector.shape_cast %23 : vector<128xf32> to vector<1x128xf32>
    %cst_8 = arith.constant 6.250000e-02 : f32
    %25 = vector.broadcast %cst_8 : f32 to vector<1x128xf32>
    %26 = arith.mulf %24, %25 : vector<1x128xf32>
    %cst_9 = arith.constant 9.99999974E-6 : f32
    %27 = vector.broadcast %cst_9 : f32 to vector<1x128xf32>
    %28 = arith.addf %26, %27 : vector<1x128xf32>
    %29 = math.rsqrt %28 : vector<1x128xf32>
    %30 = arith.mulf %1, %29 : vector<1x128xf32>
    %31 = arith.mulf %19, %30 : vector<1x128xf32>
    %32 = arith.subf %2, %31 : vector<1x128xf32>
    %33 = vector.broadcast %30 : vector<1x128xf32> to vector<16x128xf32>
    %34 = arith.mulf %12, %33 : vector<16x128xf32>
    %35 = vector.broadcast %32 : vector<1x128xf32> to vector<16x128xf32>
    %36 = arith.addf %34, %35 : vector<16x128xf32>
    %cst_10 = arith.constant 0.000000e+00 : f32
    %37 = vector.broadcast %cst_10 : f32 to vector<16x128xf32>
    %38 = arith.maximumf %36, %37 : vector<16x128xf32>
    %39 = arith.addf %38, %15 : vector<16x128xf32>
    %c128 = arith.constant 128 : index
    %c0_11 = arith.constant 0 : index
    %40 = vector.load %arg1[%c128, %c0_11] : memref<384x256xbf16, #tpu.memory_space<vmem>>, vector<128x128xbf16>
    %41 = arith.truncf %39 : vector<16x128xf32> to vector<16x128xbf16>
    %cst_12 = arith.constant dense<0.000000e+00> : vector<16x128xf32>
    %42 = tpu.matmul %41, %40, %cst_12 {dimension_numbers = #tpu.dot_dimension_numbers<[1], [0], [0], [1], [0, 0, 1, 1], [], []>} : vector<16x128xbf16>, vector<128x128xbf16>, vector<16x128xf32> -> vector<16x128xf32>
    %cst_13 = arith.constant dense<0.000000e+00> : vector<128xf32>
    %43 = vector.multi_reduction <add>, %42, %cst_13 [0] : vector<16x128xf32> to vector<128xf32>
    %44 = vector.shape_cast %43 : vector<128xf32> to vector<1x128xf32>
    %cst_14 = arith.constant 6.250000e-02 : f32
    %45 = vector.broadcast %cst_14 : f32 to vector<1x128xf32>
    %46 = arith.mulf %44, %45 : vector<1x128xf32>
    %47 = vector.broadcast %46 : vector<1x128xf32> to vector<16x128xf32>
    %48 = arith.subf %42, %47 : vector<16x128xf32>
    %49 = arith.mulf %48, %48 : vector<16x128xf32>
    %cst_15 = arith.constant dense<0.000000e+00> : vector<128xf32>
    %50 = vector.multi_reduction <add>, %49, %cst_15 [0] : vector<16x128xf32> to vector<128xf32>
    %51 = vector.shape_cast %50 : vector<128xf32> to vector<1x128xf32>
    %cst_16 = arith.constant 6.250000e-02 : f32
    %52 = vector.broadcast %cst_16 : f32 to vector<1x128xf32>
    %53 = arith.mulf %51, %52 : vector<1x128xf32>
    %cst_17 = arith.constant 9.99999974E-6 : f32
    %54 = vector.broadcast %cst_17 : f32 to vector<1x128xf32>
    %55 = arith.addf %53, %54 : vector<1x128xf32>
    %56 = math.rsqrt %55 : vector<1x128xf32>
    %57 = arith.mulf %3, %56 : vector<1x128xf32>
    %58 = arith.mulf %46, %57 : vector<1x128xf32>
    %59 = arith.subf %4, %58 : vector<1x128xf32>
    %60 = vector.broadcast %57 : vector<1x128xf32> to vector<16x128xf32>
    %61 = arith.mulf %42, %60 : vector<16x128xf32>
    %62 = vector.broadcast %59 : vector<1x128xf32> to vector<16x128xf32>
    %63 = arith.addf %61, %62 : vector<16x128xf32>
    %cst_18 = arith.constant 0.000000e+00 : f32
    %64 = vector.broadcast %cst_18 : f32 to vector<16x128xf32>
    %65 = arith.maximumf %63, %64 : vector<16x128xf32>
    %66 = arith.addf %65, %39 : vector<16x128xf32>
    %c128_19 = arith.constant 128 : index
    %c128_20 = arith.constant 128 : index
    %67 = vector.load %arg1[%c128_19, %c128_20] : memref<384x256xbf16, #tpu.memory_space<vmem>>, vector<128x128xbf16>
    %68 = arith.truncf %66 : vector<16x128xf32> to vector<16x128xbf16>
    %cst_21 = arith.constant dense<0.000000e+00> : vector<16x128xf32>
    %69 = tpu.matmul %68, %67, %cst_21 {dimension_numbers = #tpu.dot_dimension_numbers<[1], [0], [0], [1], [0, 0, 1, 1], [], []>} : vector<16x128xbf16>, vector<128x128xbf16>, vector<16x128xf32> -> vector<16x128xf32>
    %70 = vector.broadcast %6 : vector<1x128xf32> to vector<16x128xf32>
    %71 = arith.addf %69, %70 : vector<16x128xf32>
    %cst_22 = arith.constant 0.000000e+00 : f32
    %72 = vector.broadcast %cst_22 : f32 to vector<16x128xf32>
    %73 = arith.maximumf %71, %72 : vector<16x128xf32>
    %74 = arith.addf %73, %66 : vector<16x128xf32>
    %c256 = arith.constant 256 : index
    %c0_23 = arith.constant 0 : index
    %75 = vector.load %arg1[%c256, %c0_23] : memref<384x256xbf16, #tpu.memory_space<vmem>>, vector<128x128xbf16>
    %76 = arith.truncf %74 : vector<16x128xf32> to vector<16x128xbf16>
    %cst_24 = arith.constant dense<0.000000e+00> : vector<16x128xf32>
    %77 = tpu.matmul %76, %75, %cst_24 {dimension_numbers = #tpu.dot_dimension_numbers<[1], [0], [0], [1], [0, 0, 1, 1], [], []>} : vector<16x128xbf16>, vector<128x128xbf16>, vector<16x128xf32> -> vector<16x128xf32>
    %78 = vector.broadcast %7 : vector<1x128xf32> to vector<16x128xf32>
    %79 = arith.addf %77, %78 : vector<16x128xf32>
    %c0_25 = arith.constant 0 : index
    %c0_26 = arith.constant 0 : index
    %80 = vector.load %arg3[%c0_25, %c0_26] : memref<16x128xf32, #tpu.memory_space<vmem>>, vector<16x128xf32>
    tpu.vector_store %arg3[%c0_25, %c0_26], %79 {strides = array<i32>} : memref<16x128xf32, #tpu.memory_space<vmem>>, vector<16x128xf32>,
    return
  }
}

</mosaic_0001>

<llo_original>
// kernel: value_forward.1
$region0: #{value_forward.1}
  #allocation0 [shape = 'u32[]', space=smem, size = 0x4, offset = 0x4, fixed_abs, tag = 'smem constant byte address 0x4 - core index']
  #allocation1 [shape = 'u32[144,128]{1,0:T(1,128)}', space=vmem, size = 0x12000, scoped, tag = 'internal scratch']
  %s0 = inlined_call_operand.hbm [shape: f32[16,128], index: 0, kind: input, shape index: {}]
  %s1 = inlined_call_operand.hbm [shape: bf16[384,256], index: 1, kind: input, shape index: {}]
  %s2 = inlined_call_operand.hbm [shape: f32[8,256], index: 2, kind: input, shape index: {}]
  %s3 = inlined_call_operand.vmem [shape: f32[16,128], index: 3, kind: output, shape index: {}]
  %s4 = sld [smem:[#allocation0]]
  $region34: #{value_forward.1} parent=0
    _
  %s6 = ssub.s32 1, %s4
  %s7 = scalar_select 0, %s6, %s4
  $region1: #{value_forward.1} parent=0
    #allocation2 [shape = 'u8[8192]{0}', space=vmem, size = 0x2000, scoped, tag = 'input window, operand 0, single buffered']
    #allocation3 [shape = 's32[1]{0}', space=sflag, size = 0x4, scoped, tag = 'scoped memory for value_forward.1']
    #allocation4 [shape = 'u8[196608]{0}', space=vmem, size = 0x30000, scoped, tag = 'input window, operand 1, single buffered']
    #allocation5 [shape = 's32[1]{0}', space=sflag, size = 0x4, scoped, tag = 'scoped memory for value_forward.1']
    #allocation6 [shape = 'u8[8192]{0}', space=vmem, size = 0x2000, scoped, tag = 'input window, operand 2, single buffered']
    %8 = vsyncpa [#allocation3], 0
    %9 = vsyncpa [#allocation5], 0
    // Predicated region
    $region2: #{value_forward.1} parent=1 // pred_check
      _
    $region3: #{value_forward.1} parent=1 // pred_check_branch
      %11 = sbr.rel (0) target = $region5
    $region4: #{value_forward.1} parent=1 // pred_region
      %s13 = ssub.s32 256, 256
      %14 = vsyncadd [#allocation3], %s13
      %s15 = sshll.u32 [#allocation2], 4
      %s16 = int_to_ptr.vmem [resolvable:$true] %s15
      %21 = dma.hbm_to_vmem [thread:$0]  %s0, 256, %s16, [#allocation3], 128, 128, 8
    $region5: #{value_forward.1} parent=1 // pred_fallthru
      _
    // Predicated region
    $region6: #{value_forward.1} parent=1 // pred_check
      _
    $region7: #{value_forward.1} parent=1 // pred_check_branch
      %23 = sbr.rel (0) target = $region9
    $region8: #{value_forward.1} parent=1 // pred_region
      %s25 = ssub.s32 6144, 6144
      %26 = vsyncadd [#allocation5], %s25
      %s27 = sshll.u32 [#allocation4], 4
      %s28 = int_to_ptr.vmem [resolvable:$true] %s27
      %33 = dma.hbm_to_vmem [thread:$0]  %s1, 6144, %s28, [#allocation5], 128, 128, 8
    $region9: #{value_forward.1} parent=1 // pred_fallthru
      _
    // Predicated region
    $region10: #{value_forward.1} parent=1 // pred_check
      _
    $region11: #{value_forward.1} parent=1 // pred_check_branch
      %35 = sbr.rel (0) target = $region13
    $region12: #{value_forward.1} parent=1 // pred_region
      %s37 = ssub.s32 256, 256
      %38 = vsyncadd [#allocation5], %s37
      %s40 = sshll.u32 [#allocation6], 4
      %s41 = int_to_ptr.vmem [resolvable:$true] %s40
      %43 = dma.hbm_to_vmem [thread:$0]  %s2, 256, %s41, [#allocation5]
    $region13: #{value_forward.1} parent=1 // pred_fallthru
      _
    // Predicated region
    $region14: #{value_forward.1} parent=1 // pred_check
      _
    $region15: #{value_forward.1} parent=1 // pred_check_branch
      %45 = sbr.rel (0) target = $region17
    $region16: #{value_forward.1} parent=1 // pred_region
      %46 = dma.done [#allocation3], 256
    $region17: #{value_forward.1} parent=1 // pred_fallthru
      _
    // Predicated region
    $region18: #{value_forward.1} parent=1 // pred_check
      _
    $region19: #{value_forward.1} parent=1 // pred_check_branch
      %48 = sbr.rel (0) target = $region21
    $region20: #{value_forward.1} parent=1 // pred_region
      %49 = dma.done [#allocation5], 6144
    $region21: #{value_forward.1} parent=1 // pred_fallthru
      _
    // Predicated region
    $region22: #{value_forward.1} parent=1 // pred_check
      _
    $region23: #{value_forward.1} parent=1 // pred_check_branch
      %51 = sbr.rel (0) target = $region25
    $region24: #{value_forward.1} parent=1 // pred_region
      %52 = dma.done [#allocation5], 256
    $region25: #{value_forward.1} parent=1 // pred_fallthru
      _
    %v54 = vld [vmem:[#allocation6] sm:$0xff]
    %v55 = vld [vmem:[#allocation6 + $0x8] sm:$0xff]
    %v56 = vld [vmem:[#allocation2] sm:$0xff]
    %v57 = vld [vmem:[#allocation2 + $0x8] sm:$0xff]
    %v58 = vpack.c.bf16 %v57, %v56
    %v59 = vld [vmem:[#allocation4] sm:$0xff]
    %v60 = vld [vmem:[#allocation4 + $0x8] sm:$0xff]
    %v61 = vld [vmem:[#allocation4 + $0x10] sm:$0xff]
    %v62 = vld [vmem:[#allocation4 + $0x18] sm:$0xff]
    %v63 = vld [vmem:[#allocation4 + $0x20] sm:$0xff]
    %v64 = vld [vmem:[#allocation4 + $0x28] sm:$0xff]
    %v65 = vld [vmem:[#allocation4 + $0x30] sm:$0xff]
    %v66 = vld [vmem:[#allocation4 + $0x38] sm:$0xff]
    %v67 = vld [vmem:[#allocation4 + $0x40] sm:$0xff]
    %v68 = vld [vmem:[#allocation4 + $0x48] sm:$0xff]
    %v69 = vld [vmem:[#allocation4 + $0x50] sm:$0xff]
    %v70 = vld [vmem:[#allocation4 + $0x58] sm:$0xff]
    %v71 = vld [vmem:[#allocation4 + $0x60] sm:$0xff]
    %v72 = vld [vmem:[#allocation4 + $0x68] sm:$0xff]
    %v73 = vld [vmem:[#allocation4 + $0x70] sm:$0xff]
    %v74 = vld [vmem:[#allocation4 + $0x78] sm:$0xff]
    %v91 = vunpack.c.l.b16 %v59
    %v92 = vunpack.c.h.b16 %v59
    %v93 = vunpack.c.l.b16 %v60
    %v94 = vunpack.c.h.b16 %v60
    %v95 = vunpack.c.l.b16 %v61
    %v96 = vunpack.c.h.b16 %v61
    %v97 = vunpack.c.l.b16 %v62
    %v98 = vunpack.c.h.b16 %v62
    %v99 = vunpack.c.l.b16 %v63
    %v100 = vunpack.c.h.b16 %v63
    %v101 = vunpack.c.l.b16 %v64
    %v102 = vunpack.c.h.b16 %v64
    %v103 = vunpack.c.l.b16 %v65
    %v104 = vunpack.c.h.b16 %v65
    %v105 = vunpack.c.l.b16 %v66
    %v106 = vunpack.c.h.b16 %v66
    %v107 = vunpack.c.l.b16 %v67
    %v108 = vunpack.c.h.b16 %v67
    %v109 = vunpack.c.l.b16 %v68
    %v110 = vunpack.c.h.b16 %v68
    %v111 = vunpack.c.l.b16 %v69
    %v112 = vunpack.c.h.b16 %v69
    %v113 = vunpack.c.l.b16 %v70
    %v114 = vunpack.c.h.b16 %v70
    %v115 = vunpack.c.l.b16 %v71
    %v116 = vunpack.c.h.b16 %v71
    %v117 = vunpack.c.l.b16 %v72
    %v118 = vunpack.c.h.b16 %v72
    %v119 = vunpack.c.l.b16 %v73
    %v120 = vunpack.c.h.b16 %v73
    %v121 = vunpack.c.l.b16 %v74
    %v122 = vunpack.c.h.b16 %v74
    %v123 = vpack.c.b16 %v93, %v91
    %v124 = vpack.c.b16 %v94, %v92
    %v125 = vpack.c.b16 %v97, %v95
    %v126 = vpack.c.b16 %v98, %v96
    %v127 = vpack.c.b16 %v101, %v99
    %v128 = vpack.c.b16 %v102, %v100
    %v129 = vpack.c.b16 %v105, %v103
    %v130 = vpack.c.b16 %v106, %v104
    %v131 = vpack.c.b16 %v109, %v107
    %v132 = vpack.c.b16 %v110, %v108
    %v133 = vpack.c.b16 %v113, %v111
    %v134 = vpack.c.b16 %v114, %v112
    %v135 = vpack.c.b16 %v117, %v115
    %v136 = vpack.c.b16 %v118, %v116
    %v137 = vpack.c.b16 %v121, %v119
    %v138 = vpack.c.b16 %v122, %v120
    %155 = vmatprep.subr.bf16.mxu0 %v124
    %156 = vmatpush1.bf16.msra.mxu0 %v123
    %157 = vmatprep.subr.bf16.mxu0 %v126
    %158 = vmatpush1.bf16.msra.mxu0 %v125
    %159 = vmatprep.subr.bf16.mxu0 %v128
    %160 = vmatpush1.bf16.msra.mxu0 %v127
    %161 = vmatprep.subr.bf16.mxu0 %v130
    %162 = vmatpush1.bf16.msra.mxu0 %v129
    %163 = vmatprep.subr.bf16.mxu0 %v132
    %164 = vmatpush1.bf16.msra.mxu0 %v131
    %165 = vmatprep.subr.bf16.mxu0 %v134
    %166 = vmatpush1.bf16.msra.mxu0 %v133
    %167 = vmatprep.subr.bf16.mxu0 %v136
    %168 = vmatpush1.bf16.msra.mxu0 %v135
    %169 = vmatprep.subr.bf16.mxu0 %v138
    %170 = vmatpush1.bf16.msra.mxu0 %v137
    %171 = vmatprep.subr.bf16.mxu0 0
    %172 = vmatpush1.bf16.msra.mxu0 0
    %173 = vmatprep.subr.bf16.mxu0 0
    %174 = vmatpush1.bf16.msra.mxu0 0
    %175 = vmatprep.subr.bf16.mxu0 0
    %176 = vmatpush1.bf16.msra.mxu0 0
    %177 = vmatprep.subr.bf16.mxu0 0
    %178 = vmatpush1.bf16.msra.mxu0 0
    %179 = vmatprep.subr.bf16.mxu0 0
    %180 = vmatpush1.bf16.msra.mxu0 0
    %181 = vmatprep.subr.bf16.mxu0 0
    %182 = vmatpush1.bf16.msra.mxu0 0
    %183 = vmatprep.subr.bf16.mxu0 0
    %184 = vmatpush1.bf16.msra.mxu0 0
    %185 = vmatprep.subr.bf16.mxu0 0
    %186 = vmatpush1.bf16.msra.mxu0 0
    %187 = vmatprep.mubr.bf16.mxu0 0
    %188 = vmatmul.mubr.bf16.gmra.mrb[0].mxu0 %v58
    %v189 = vpop.f32.mrb[0].mxu0
    %v190 = vadd.f32 0.0, %v189
    %v191 = vpop.f32.mrb[0].mxu0
    %v192 = vadd.f32 0.0, %v191
    %v193 = vpop.f32.mrb[0].mxu0
    %v194 = vadd.f32 0.0, %v193
    %v195 = vpop.f32.mrb[0].mxu0
    %v196 = vadd.f32 0.0, %v195
    %197 = vdwg.mxu0
    %v198 = vlaneseq
    %v199 = vshrl.u32 %v198, 7
    %v200 = vsub.s32 2, %v199
    %v201 = vrot.slane %v54, %v200
    %v202 = vadd.f32 %v192, %v201
    %v203 = vadd.f32 %v196, %v201
    %v204 = vadd.f32 %v190, %v194
    %v205 = vrot.slane %v204, 4
    %v206 = vadd.f32 %v204, %v205
    %v207 = vrot.slane %v206, 2
    %v208 = vadd.f32 %v206, %v207
    %v209 = vrot.slane %v208, 1
    %v210 = vadd.f32 %v208, %v209
    %v211 = vmul.f32 %v210, 0.0625
    %v212 = vsub.f32 %v190, %v211
    %v213 = vsub.f32 %v194, %v211
    %v214 = vmul.f32 %v212, %v212
    %v215 = vmul.f32 %v213, %v213
    %v216 = vadd.f32 %v214, %v215
    %v217 = vrot.slane %v216, 4
    %v218 = vadd.f32 %v216, %v217
    %v219 = vrot.slane %v218, 2
    %v220 = vadd.f32 %v218, %v219
    %v221 = vrot.slane %v220, 1
    %v222 = vadd.f32 %v220, %v221
    %v223 = vmul.f32 %v222, 0.0625
    %v224 = vadd.f32 %v223, 1e-05
    %v225 = vrsqrt.pop %v224
    %v226 = vmul.f32 %v54, %v225
    %v227 = vmul.f32 %v211, %v226
    %v228 = vsub.f32 %v55, %v227
    %v229 = vlaneseq
    %v230 = vshrl.u32 %v229, 7
    %v231 = vsub.s32 0, %v230
    %v232 = vrot.slane %v226, %v231
    %v233 = vmul.f32 %v190, %v232
    %v234 = vmul.f32 %v194, %v232
    %v235 = vlaneseq
    %v236 = vshrl.u32 %v235, 7
    %v237 = vsub.s32 0, %v236
    %v238 = vrot.slane %v228, %v237
    %v239 = vadd.f32 %v233, %v238
    %v240 = vadd.f32 %v234, %v238
    %v241 = vmax.f32 %v239, 0.0
    %v242 = vmax.f32 %v240, 0.0
    %v243 = vadd.f32 %v241, %v202
    %v244 = vadd.f32 %v242, %v203
    %v245 = vld [vmem:[#allocation4 + $0x80] sm:$0xf]
    %v246 = vld [vmem:[#allocation4 + $0x88] sm:$0xf]
    %v247 = vld [vmem:[#allocation4 + $0x90] sm:$0xf]
    %v248 = vld [vmem:[#allocation4 + $0x98] sm:$0xf]
    %v249 = vld [vmem:[#allocation4 + $0xa0] sm:$0xf]
    %v250 = vld [vmem:[#allocation4 + $0xa8] sm:$0xf]
    %v251 = vld [vmem:[#allocation4 + $0xb0] sm:$0xf]
    %v252 = vld [vmem:[#allocation4 + $0xb8] sm:$0xf]
    %v253 = vld [vmem:[#allocation4 + $0xc0] sm:$0xf]
    %v254 = vld [vmem:[#allocation4 + $0xc8] sm:$0xf]
    %v255 = vld [vmem:[#allocation4 + $0xd0] sm:$0xf]
    %v256 = vld [vmem:[#allocation4 + $0xd8] sm:$0xf]
    %v257 = vld [vmem:[#allocation4 + $0xe0] sm:$0xf]
    %v258 = vld [vmem:[#allocation4 + $0xe8] sm:$0xf]
    %v259 = vld [vmem:[#allocation4 + $0xf0] sm:$0xf]
    %v260 = vld [vmem:[#allocation4 + $0xf8] sm:$0xf]
    %v261 = vpack.c.bf16 %v244, %v243
    %v278 = vunpack.c.l.b16 %v245
    %v279 = vunpack.c.l.b16 %v246
    %v280 = vunpack.c.l.b16 %v247
    %v281 = vunpack.c.l.b16 %v248
    %v282 = vunpack.c.l.b16 %v249
    %v283 = vunpack.c.l.b16 %v250
    %v284 = vunpack.c.l.b16 %v251
    %v285 = vunpack.c.l.b16 %v252
    %v286 = vunpack.c.l.b16 %v253
    %v287 = vunpack.c.l.b16 %v254
    %v288 = vunpack.c.l.b16 %v255
    %v289 = vunpack.c.l.b16 %v256
    %v290 = vunpack.c.l.b16 %v257
    %v291 = vunpack.c.l.b16 %v258
    %v292 = vunpack.c.l.b16 %v259
    %v293 = vunpack.c.l.b16 %v260
    %v294 = vpack.c.b16 %v279, %v278
    %v295 = vpack.c.b16 %v281, %v280
    %v296 = vpack.c.b16 %v283, %v282
    %v297 = vpack.c.b16 %v285, %v284
    %v298 = vpack.c.b16 %v287, %v286
    %v299 = vpack.c.b16 %v289, %v288
    %v300 = vpack.c.b16 %v291, %v290
    %v301 = vpack.c.b16 %v293, %v292
    %310 = vmatprep.subr.bf16.mxu0 0
    %311 = vmatpush1.bf16.msra.mxu0 %v294
    %312 = vmatprep.subr.bf16.mxu0 0
    %313 = vmatpush1.bf16.msra.mxu0 %v295
    %314 = vmatprep.subr.bf16.mxu0 0
    %315 = vmatpush1.bf16.msra.mxu0 %v296
    %316 = vmatprep.subr.bf16.mxu0 0
    %317 = vmatpush1.bf16.msra.mxu0 %v297
    %318 = vmatprep.subr.bf16.mxu0 0
    %319 = vmatpush1.bf16.msra.mxu0 %v298
    %320 = vmatprep.subr.bf16.mxu0 0
    %321 = vmatpush1.bf16.msra.mxu0 %v299
    %322 = vmatprep.subr.bf16.mxu0 0
    %323 = vmatpush1.bf16.msra.mxu0 %v300
    %324 = vmatprep.subr.bf16.mxu0 0
    %325 = vmatpush1.bf16.msra.mxu0 %v301
    %326 = vmatprep.subr.bf16.mxu0 0
    %327 = vmatpush1.bf16.msra.mxu0 0
    %328 = vmatprep.subr.bf16.mxu0 0
    %329 = vmatpush1.bf16.msra.mxu0 0
    %330 = vmatprep.subr.bf16.mxu0 0
    %331 = vmatpush1.bf16.msra.mxu0 0
    %332 = vmatprep.subr.bf16.mxu0 0
    %333 = vmatpush1.bf16.msra.mxu0 0
    %334 = vmatprep.subr.bf16.mxu0 0
    %335 = vmatpush1.bf16.msra.mxu0 0
    %336 = vmatprep.subr.bf16.mxu0 0
    %337 = vmatpush1.bf16.msra.mxu0 0
    %338 = vmatprep.subr.bf16.mxu0 0
    %339 = vmatpush1.bf16.msra.mxu0 0
    %340 = vmatprep.subr.bf16.mxu0 0
    %341 = vmatpush1.bf16.msra.mxu0 0
    %342 = vmatprep.mubr.bf16.mxu0 0
    %343 = vmatmul.mubr.bf16.gmra.mrb[0].mxu0 %v261
    %v344 = vpop.f32.mrb[0].mxu0
    %v345 = vadd.f32 0.0, %v344
    %v346 = vpop.f32.mrb[0].mxu0
    %v347 = vpop.f32.mrb[0].mxu0
    %v348 = vadd.f32 0.0, %v347
    %v349 = vpop.f32.mrb[0].mxu0
    %350 = vdwg.mxu0
    %v351 = vadd.f32 %v345, %v348
    %v352 = vrot.slane %v351, 4
    %v353 = vadd.f32 %v351, %v352
    %v354 = vrot.slane %v353, 2
    %v355 = vadd.f32 %v353, %v354
    %v356 = vrot.slane %v355, 1
    %v357 = vadd.f32 %v355, %v356
    %v358 = vmul.f32 %v357, 0.0625
    %v359 = vsub.f32 %v345, %v358
    %v360 = vsub.f32 %v348, %v358
    %v361 = vmul.f32 %v359, %v359
    %v362 = vmul.f32 %v360, %v360
    %v363 = vadd.f32 %v361, %v362
    %v364 = vrot.slane %v363, 4
    %v365 = vadd.f32 %v363, %v364
    %v366 = vrot.slane %v365, 2
    %v367 = vadd.f32 %v365, %v366
    %v368 = vrot.slane %v367, 1
    %v369 = vadd.f32 %v367, %v368
    %v370 = vmul.f32 %v369, 0.0625
    %v371 = vadd.f32 %v370, 1e-05
    %v372 = vrsqrt.pop %v371
    %v373 = vmul.f32 %v54, %v372
    %v374 = vmul.f32 %v358, %v373
    %v375 = vsub.f32 %v55, %v374
    %v376 = vlaneseq
    %v377 = vshrl.u32 %v376, 7
    %v378 = vsub.s32 1, %v377
    %v379 = vrot.slane %v373, %v378
    %v380 = vmul.f32 %v345, %v379
    %v381 = vmul.f32 %v348, %v379
    %v382 = vlaneseq
    %v383 = vshrl.u32 %v382, 7
    %v384 = vsub.s32 1, %v383
    %v385 = vrot.slane %v375, %v384
    %v386 = vadd.f32 %v380, %v385
    %v387 = vadd.f32 %v381, %v385
    %v388 = vmax.f32 %v386, 0.0
    %v389 = vmax.f32 %v387, 0.0
    %v390 = vadd.f32 %v388, %v243
    %v391 = vadd.f32 %v389, %v244
    %v392 = vld [vmem:[#allocation4 + $0x84] sm:$0xf]
    %v393 = vld [vmem:[#allocation4 + $0x8c] sm:$0xf]
    %v394 = vld [vmem:[#allocation4 + $0x94] sm:$0xf]
    %v395 = vld [vmem:[#allocation4 + $0x9c] sm:$0xf]
    %v396 = vld [vmem:[#allocation4 + $0xa4] sm:$0xf]
    %v397 = vld [vmem:[#allocation4 + $0xac] sm:$0xf]
    %v398 = vld [vmem:[#allocation4 + $0xb4] sm:$0xf]
    %v399 = vld [vmem:[#allocation4 + $0xbc] sm:$0xf]
    %v400 = vld [vmem:[#allocation4 + $0xc4] sm:$0xf]
    %v401 = vld [vmem:[#allocation4 + $0xcc] sm:$0xf]
    %v402 = vld [vmem:[#allocation4 + $0xd4] sm:$0xf]
    %v403 = vld [vmem:[#allocation4 + $0xdc] sm:$0xf]
    %v404 = vld [vmem:[#allocation4 + $0xe4] sm:$0xf]
    %v405 = vld [vmem:[#allocation4 + $0xec] sm:$0xf]
    %v406 = vld [vmem:[#allocation4 + $0xf4] sm:$0xf]
    %v407 = vld [vmem:[#allocation4 + $0xfc] sm:$0xf]
    %v408 = vpack.c.bf16 %v391, %v390
    %v409 = vlaneseq
    %v410 = vshrl.u32 %v409, 7
    %v411 = vsub.s32 2, %v410
    %v412 = vrot.slane %v55, %v411
    %v429 = vunpack.c.l.b16 %v392
    %v430 = vunpack.c.l.b16 %v393
    %v431 = vunpack.c.l.b16 %v394
    %v432 = vunpack.c.l.b16 %v395
    %v433 = vunpack.c.l.b16 %v396
    %v434 = vunpack.c.l.b16 %v397
    %v435 = vunpack.c.l.b16 %v398
    %v436 = vunpack.c.l.b16 %v399
    %v437 = vunpack.c.l.b16 %v400
    %v438 = vunpack.c.l.b16 %v401
    %v439 = vunpack.c.l.b16 %v402
    %v440 = vunpack.c.l.b16 %v403
    %v441 = vunpack.c.l.b16 %v404
    %v442 = vunpack.c.l.b16 %v405
    %v443 = vunpack.c.l.b16 %v406
    %v444 = vunpack.c.l.b16 %v407
    %v445 = vpack.c.b16 %v430, %v429
    %v446 = vpack.c.b16 %v432, %v431
    %v447 = vpack.c.b16 %v434, %v433
    %v448 = vpack.c.b16 %v436, %v435
    %v449 = vpack.c.b16 %v438, %v437
    %v450 = vpack.c.b16 %v440, %v439
    %v451 = vpack.c.b16 %v442, %v441
    %v452 = vpack.c.b16 %v444, %v443
    %461 = vmatprep.subr.bf16.mxu0 0
    %462 = vmatpush1.bf16.msra.mxu0 %v445
    %463 = vmatprep.subr.bf16.mxu0 0
    %464 = vmatpush1.bf16.msra.mxu0 %v446
    %465 = vmatprep.subr.bf16.mxu0 0
    %466 = vmatpush1.bf16.msra.mxu0 %v447
    %467 = vmatprep.subr.bf16.mxu0 0
    %468 = vmatpush1.bf16.msra.mxu0 %v448
    %469 = vmatprep.subr.bf16.mxu0 0
    %470 = vmatpush1.bf16.msra.mxu0 %v449
    %471 = vmatprep.subr.bf16.mxu0 0
    %472 = vmatpush1.bf16.msra.mxu0 %v450
    %473 = vmatprep.subr.bf16.mxu0 0
    %474 = vmatpush1.bf16.msra.mxu0 %v451
    %475 = vmatprep.subr.bf16.mxu0 0
    %476 = vmatpush1.bf16.msra.mxu0 %v452
    %477 = vmatprep.subr.bf16.mxu0 0
    %478 = vmatpush1.bf16.msra.mxu0 0
    %479 = vmatprep.subr.bf16.mxu0 0
    %480 = vmatpush1.bf16.msra.mxu0 0
    %481 = vmatprep.subr.bf16.mxu0 0
    %482 = vmatpush1.bf16.msra.mxu0 0
    %483 = vmatprep.subr.bf16.mxu0 0
    %484 = vmatpush1.bf16.msra.mxu0 0
    %485 = vmatprep.subr.bf16.mxu0 0
    %486 = vmatpush1.bf16.msra.mxu0 0
    %487 = vmatprep.subr.bf16.mxu0 0
    %488 = vmatpush1.bf16.msra.mxu0 0
    %489 = vmatprep.subr.bf16.mxu0 0
    %490 = vmatpush1.bf16.msra.mxu0 0
    %491 = vmatprep.subr.bf16.mxu0 0
    %492 = vmatpush1.bf16.msra.mxu0 0
    %493 = vmatprep.mubr.bf16.mxu0 0
    %494 = vmatmul.mubr.bf16.gmra.mrb[0].mxu0 %v408
    %v495 = vpop.f32.mrb[0].mxu0
    %v496 = vadd.f32 %v412, %v495
    %v497 = vpop.f32.mrb[0].mxu0
    %v498 = vpop.f32.mrb[0].mxu0
    %v499 = vadd.f32 %v412, %v498
    %v500 = vpop.f32.mrb[0].mxu0
    %501 = vdwg.mxu0
    %v502 = vmax.f32 %v496, 0.0
    %v503 = vmax.f32 %v499, 0.0
    %v504 = vadd.f32 %v502, %v390
    %v505 = vadd.f32 %v503, %v391
    %v506 = vld [vmem:[#allocation4 + $0x100] sm:$0xf]
    %v507 = vld [vmem:[#allocation4 + $0x108] sm:$0xf]
    %v508 = vld [vmem:[#allocation4 + $0x110] sm:$0xf]
    %v509 = vld [vmem:[#allocation4 + $0x118] sm:$0xf]
    %v510 = vld [vmem:[#allocation4 + $0x120] sm:$0xf]
    %v511 = vld [vmem:[#allocation4 + $0x128] sm:$0xf]
    %v512 = vld [vmem:[#allocation4 + $0x130] sm:$0xf]
    %v513 = vld [vmem:[#allocation4 + $0x138] sm:$0xf]
    %v514 = vld [vmem:[#allocation4 + $0x140] sm:$0xf]
    %v515 = vld [vmem:[#allocation4 + $0x148] sm:$0xf]
    %v516 = vld [vmem:[#allocation4 + $0x150] sm:$0xf]
    %v517 = vld [vmem:[#allocation4 + $0x158] sm:$0xf]
    %v518 = vld [vmem:[#allocation4 + $0x160] sm:$0xf]
    %v519 = vld [vmem:[#allocation4 + $0x168] sm:$0xf]
    %v520 = vld [vmem:[#allocation4 + $0x170] sm:$0xf]
    %v521 = vld [vmem:[#allocation4 + $0x178] sm:$0xf]
    %v522 = vpack.c.bf16 %v505, %v504
    %v523 = vlaneseq
    %v524 = vshrl.u32 %v523, 7
    %v525 = vsub.s32 3, %v524
    %v526 = vrot.slane %v54, %v525
    %v543 = vunpack.c.l.b16 %v506
    %v544 = vunpack.c.l.b16 %v507
    %v545 = vunpack.c.l.b16 %v508
    %v546 = vunpack.c.l.b16 %v509
    %v547 = vunpack.c.l.b16 %v510
    %v548 = vunpack.c.l.b16 %v511
    %v549 = vunpack.c.l.b16 %v512
    %v550 = vunpack.c.l.b16 %v513
    %v551 = vunpack.c.l.b16 %v514
    %v552 = vunpack.c.l.b16 %v515
    %v553 = vunpack.c.l.b16 %v516
    %v554 = vunpack.c.l.b16 %v517
    %v555 = vunpack.c.l.b16 %v518
    %v556 = vunpack.c.l.b16 %v519
    %v557 = vunpack.c.l.b16 %v520
    %v558 = vunpack.c.l.b16 %v521
    %v559 = vpack.c.b16 %v544, %v543
    %v560 = vpack.c.b16 %v546, %v545
    %v561 = vpack.c.b16 %v548, %v547
    %v562 = vpack.c.b16 %v550, %v549
    %v563 = vpack.c.b16 %v552, %v551
    %v564 = vpack.c.b16 %v554, %v553
    %v565 = vpack.c.b16 %v556, %v555
    %v566 = vpack.c.b16 %v558, %v557
    %575 = vmatprep.subr.bf16.mxu0 0
    %576 = vmatpush1.bf16.msra.mxu0 %v559
    %577 = vmatprep.subr.bf16.mxu0 0
    %578 = vmatpush1.bf16.msra.mxu0 %v560
    %579 = vmatprep.subr.bf16.mxu0 0
    %580 = vmatpush1.bf16.msra.mxu0 %v561
    %581 = vmatprep.subr.bf16.mxu0 0
    %582 = vmatpush1.bf16.msra.mxu0 %v562
    %583 = vmatprep.subr.bf16.mxu0 0
    %584 = vmatpush1.bf16.msra.mxu0 %v563
    %585 = vmatprep.subr.bf16.mxu0 0
    %586 = vmatpush1.bf16.msra.mxu0 %v564
    %587 = vmatprep.subr.bf16.mxu0 0
    %588 = vmatpush1.bf16.msra.mxu0 %v565
    %589 = vmatprep.subr.bf16.mxu0 0
    %590 = vmatpush1.bf16.msra.mxu0 %v566
    %591 = vmatprep.subr.bf16.mxu0 0
    %592 = vmatpush1.bf16.msra.mxu0 0
    %593 = vmatprep.subr.bf16.mxu0 0
    %594 = vmatpush1.bf16.msra.mxu0 0
    %595 = vmatprep.subr.bf16.mxu0 0
    %596 = vmatpush1.bf16.msra.mxu0 0
    %597 = vmatprep.subr.bf16.mxu0 0
    %598 = vmatpush1.bf16.msra.mxu0 0
    %599 = vmatprep.subr.bf16.mxu0 0
    %600 = vmatpush1.bf16.msra.mxu0 0
    %601 = vmatprep.subr.bf16.mxu0 0
    %602 = vmatpush1.bf16.msra.mxu0 0
    %603 = vmatprep.subr.bf16.mxu0 0
    %604 = vmatpush1.bf16.msra.mxu0 0
    %605 = vmatprep.subr.bf16.mxu0 0
    %606 = vmatpush1.bf16.msra.mxu0 0
    %607 = vmatprep.mubr.bf16.mxu0 0
    %608 = vmatmul.mubr.bf16.gmra.mrb[0].mxu0 %v522
    %v609 = vpop.f32.mrb[0].mxu0
    %v610 = vadd.f32 %v526, %v609
    %v611 = vpop.f32.mrb[0].mxu0
    %v612 = vpop.f32.mrb[0].mxu0
    %v613 = vadd.f32 %v526, %v612
    %v614 = vpop.f32.mrb[0].mxu0
    %615 = vdwg.mxu0
    %616 = vst [vmem:[%s3] sm:$0xff] %v610
    %617 = vst [vmem:[%s3 + $0x8] sm:$0xff] %v613
    // Predicated region
    $region26: #{value_forward.1} parent=1 // pred_check
      _
    $region27: #{value_forward.1} parent=1 // pred_check_branch
      %619 = sbr.rel (0) target = $region29
    $region28: #{value_forward.1} parent=1 // pred_region
      _
    $region29: #{value_forward.1} parent=1 // pred_fallthru
      _
    // Predicated region
    $region30: #{value_forward.1} parent=1 // pred_check
      _
    $region31: #{value_forward.1} parent=1 // pred_check_branch
      %621 = sbr.rel (0) target = $region33
    $region32: #{value_forward.1} parent=1 // pred_region
      _
    $region33: #{value_forward.1} parent=1 // pred_fallthru
      _
    %622 = vsyncpa [#allocation3], 1
    %623 = vsyncpa [#allocation5], 1

</llo_original>
